<compile_context>
chip_gen: v5e
topology: v5e:2x2
jax: 0.10.0
libtpu: 0.0.40
codegen_flags: <defaults>
</compile_context>

<pallas_src>
import functools
import math

import jax
import jax.numpy as jnp
from jax.experimental import pallas as pl
from jax.experimental.pallas import tpu as pltpu

LANES = 128
SUBLANES = 8
# Per-input block byte targets (f32: 8192 rows / 16384 rows respectively).
_SMALL_VMEM_BLOCK_BYTES = 4 * 1024 * 1024   # <=64 MiB VMEM parts (v7x)
_LARGE_VMEM_BLOCK_BYTES = 8 * 1024 * 1024   # 128 MiB VMEM parts (v5e/v6e)


@functools.lru_cache(maxsize=None)
def _vmem_capacity_bytes():
    try:
        cap = getattr(pltpu.get_tpu_info(), "vmem_capacity_bytes", None)
        if cap:
            return int(cap)
    except Exception:
        pass
    return 64 * 1024 * 1024  # conservative (v7x-sized) fallback


def _block_rows_cap(itemsize):
    target = (_LARGE_VMEM_BLOCK_BYTES
              if _vmem_capacity_bytes() >= 96 * 1024 * 1024
              else _SMALL_VMEM_BLOCK_BYTES)
    rows = target // (LANES * itemsize)
    return max(SUBLANES, (rows // SUBLANES) * SUBLANES)


def _make_kernel(*, rows, block_rows, nblocks, per_core, num_cores, acc_rows):
    """Builds the reduction kernel; all sizing is static (closed over)."""
    ragged = (rows % block_rows) != 0           # last block hangs past the array
    needs_skip = (num_cores * per_core) != nblocks
    last_g = nblocks - 1
    valid_rows_last = rows - last_g * block_rows

    def kernel(yp_ref, yt_ref, sum_ref, cnt_ref, acc_ref, num_ref):
        i = pl.program_id(1)                     # per-core reduction step
        g = pl.program_id(0) * per_core + i      # global block id

        @pl.when(i == 0)
        def _():
            acc_ref[...] = jnp.zeros_like(acc_ref)
            num_ref[...] = jnp.zeros_like(num_ref)

        yp = yp_ref[...].astype(jnp.float32)
        yt = yt_ref[...].astype(jnp.float32)
        value_mask = yt != 0.0

        def accumulate(mask):
            diff = jnp.where(mask, yp - yt, jnp.float32(0.0))
            sq = diff * diff
            cm = mask.astype(jnp.float32)
            if block_rows != acc_rows:
                # Fold the block down to one (8, 128) tile with pure vreg-wise
                # VPU adds (reduction over the leading, non-lane/sublane axis).
                sq = jnp.sum(sq.reshape(block_rows // acc_rows, acc_rows, LANES), axis=0)
                cm = jnp.sum(cm.reshape(block_rows // acc_rows, acc_rows, LANES), axis=0)
            acc_ref[...] += sq
            num_ref[...] += cm

        if ragged:
            # Hot path: fully in-bounds blocks, no row-index masking at all.
            @pl.when(g < last_g)
            def _():
                accumulate(value_mask)

            # Only the single last block reads past the true row count; mask
            # rows beyond it (garbage / possible NaNs).  The iota/compare work
            # runs once, off the hot loop.  Any g > last_g (uneven per-core
            # split) falls through both guards and is skipped entirely.
            @pl.when(g == last_g)
            def _():
                row = jax.lax.broadcasted_iota(jnp.int32, value_mask.shape, 0)
                accumulate(jnp.logical_and(value_mask, row < valid_rows_last))
        elif needs_skip:
            @pl.when(g < nblocks)
            def _():
                accumulate(value_mask)
        else:
            accumulate(value_mask)

        @pl.when(i == per_core - 1)
        def _():
            # One small cross-lane reduce per core; sqrt/divide live in the wrapper.
            sum_ref[0, 0] = jnp.sum(acc_ref[...])
            cnt_ref[0, 0] = jnp.sum(num_ref[...])

    return kernel


def _partial_sums_pallas(yp2, yt2, max_block_rows=None):
    """Partial (sum of squared masked diffs, masked count) over (rows, 128) arrays."""
    rows = yp2.shape[0]
    itemsize = max(jnp.dtype(yp2.dtype).itemsize, jnp.dtype(yt2.dtype).itemsize)
    cap = _block_rows_cap(itemsize)
    if max_block_rows is not None:
        cap = min(cap, max(SUBLANES, (max_block_rows // SUBLANES) * SUBLANES))
    block_rows = min(rows, cap)
    nblocks = pl.cdiv(rows, block_rows)
    # Leading "parallel" axis: 2-way TensorCore split on v7x, harmless
    # sequential split on single-core parts.
    num_cores = 2 if nblocks >= 2 else 1
    per_core = pl.cdiv(nblocks, num_cores)
    acc_rows = SUBLANES if block_rows % SUBLANES == 0 else block_rows
    last_g = nblocks - 1

    if num_cores * per_core != nblocks:
        def in_index_map(c, i):
            # Clamp the (skipped) overhang step of the uneven core split so the
            # DMA window stays in bounds; its contribution is gated off in-kernel.
            return (jnp.minimum(c * per_core + i, last_g), 0)
    else:
        def in_index_map(c, i):
            return (c * per_core + i, 0)

    kernel = _make_kernel(rows=rows, block_rows=block_rows, nblocks=nblocks,
                          per_core=per_core, num_cores=num_cores, acc_rows=acc_rows)

    # Double-buffered inputs + small accumulators + headroom.
    block_bytes = block_rows * LANES * (yp2.dtype.itemsize + yt2.dtype.itemsize)
    vmem_limit = max(2 * block_bytes + 8 * 1024 * 1024, 16 * 1024 * 1024)

    part_sum, part_cnt = pl.pallas_call(
        kernel,
        out_shape=(
            jax.ShapeDtypeStruct((num_cores, 1), jnp.float32),
            jax.ShapeDtypeStruct((num_cores, 1), jnp.float32),
        ),
        grid_spec=pltpu.PrefetchScalarGridSpec(
            num_scalar_prefetch=0,
            grid=(num_cores, per_core),
            in_specs=[
                pl.BlockSpec((block_rows, LANES), in_index_map),
                pl.BlockSpec((block_rows, LANES), in_index_map),
            ],
            out_specs=[
                pl.BlockSpec((1, 1), lambda c, i: (c, 0), memory_space=pltpu.SMEM),
                pl.BlockSpec((1, 1), lambda c, i: (c, 0), memory_space=pltpu.SMEM),
            ],
            scratch_shapes=[
                pltpu.VMEM((acc_rows, LANES), jnp.float32),  # sum of squares
                pltpu.VMEM((acc_rows, LANES), jnp.float32),  # mask count
            ],
        ),
        compiler_params=pltpu.CompilerParams(
            dimension_semantics=("parallel", "arbitrary"),
            vmem_limit_bytes=vmem_limit,
        ),
    )(yp2, yt2)
    return jnp.sum(part_sum), jnp.sum(part_cnt)


def masked_rmse_loss(y_pred, y_true, max_block_rows=None):
    """Pallas equivalent of MaskedRMSELoss.forward; returns an f32 scalar."""
    assert y_pred.shape == y_true.shape, (y_pred.shape, y_true.shape)

    n = math.prod(y_pred.shape)
    yp_flat = jnp.ravel(y_pred)   # native dtype; f32 cast happens in-kernel
    yt_flat = jnp.ravel(y_true)

    rows = n // LANES
    full = rows * LANES
    lane_tail = n - full

    total_sum = jnp.float32(0.0)
    total_cnt = jnp.float32(0.0)

    if rows > 0:
        if lane_tail:
            # No jnp.pad of both arrays: slice the lane-aligned prefix for the
            # kernel and fold the <=127-element tail below with plain jnp.
            yp2 = yp_flat[:full].reshape(rows, LANES)
            yt2 = yt_flat[:full].reshape(rows, LANES)
        else:
            yp2 = yp_flat.reshape(rows, LANES)   # pure metadata reshape, no copy
            yt2 = yt_flat.reshape(rows, LANES)
        s, c = _partial_sums_pallas(yp2, yt2, max_block_rows=max_block_rows)
        total_sum = total_sum + s
        total_cnt = total_cnt + c

    if lane_tail:
        yp_t = yp_flat[full:].astype(jnp.float32)
        yt_t = yt_flat[full:].astype(jnp.float32)
        m = yt_t != 0.0
        d = jnp.where(m, yp_t - yt_t, jnp.float32(0.0))
        total_sum = total_sum + jnp.sum(d * d)
        total_cnt = total_cnt + jnp.sum(m.astype(jnp.float32))

    # TODO(synk): for > ~2^24 masked elements the f32 partials lose low bits;
    # acceptable for a loss value, documented here rather than fixed.
    return jnp.sqrt(total_sum / total_cnt)


def _reference(y_pred, y_true):
    mask = y_true != 0
    diff = jnp.where(mask, y_pred.astype(jnp.float32) - y_true.astype(jnp.float32), 0.0)
    cnt = jnp.sum(mask.astype(jnp.float32))
    return jnp.sqrt(jnp.sum(diff * diff) / cnt)


def _make_inputs(key, shape, zero_frac=0.4):
    k1, k2, k3 = jax.random.split(key, 3)
    y_pred = jax.random.normal(k1, shape, dtype=jnp.float32)
    y_true_dense = jax.random.normal(k2, shape, dtype=jnp.float32)
    keep = jax.random.uniform(k3, shape) > zero_frac   # exact zeros in the target
    y_true = jnp.where(keep, y_true_dense, 0.0)
    return y_pred, y_true


if __name__ == "__main__":
    key = jax.random.PRNGKey(0)
    k_a, k_b, k_c = jax.random.split(key, 3)

    # Main case: NCHW, lane-aligned element count -> single-block kernel path.
    shape = (2, 4, 16, 16)
    y_pred, y_true = _make_inputs(k_a, shape)
    loss = jax.block_until_ready(masked_rmse_loss(y_pred, y_true))
    ref = jax.block_until_ready(_reference(y_pred, y_true))
    assert jnp.allclose(loss, ref, rtol=1e-5, atol=1e-6), (loss, ref)

    # Ragged case: 385 elements -> 3 full lane rows in the kernel + 1-element
    # jnp tail combined in the wrapper.
    yp2, yt2 = _make_inputs(k_b, (5, 77))
    loss2 = jax.block_until_ready(masked_rmse_loss(yp2, yt2))
    ref2 = jax.block_until_ready(_reference(yp2, yt2))
    assert jnp.allclose(loss2, ref2, rtol=1e-5, atol=1e-6), (loss2, ref2)

    # Tiny case (< 128 elements): wrapper-only path, no kernel launch.
    yp3, yt3 = _make_inputs(k_c, (3, 5, 7))
    loss3 = jax.block_until_ready(masked_rmse_loss(yp3, yt3))
    ref3 = jax.block_until_ready(_reference(yp3, yt3))
    assert jnp.allclose(loss3, ref3, rtol=1e-5, atol=1e-6), (loss3, ref3)

    print("KERNEL_OK")
</pallas_src>

<mosaic_0001>
module attributes {stable_mosaic.version = 11 : i64} {
  func.func @kernel(%arg0: i32, %arg1: i32, %arg2: memref<16x128xf32, #tpu.memory_space<vmem>>, %arg3: memref<16x128xf32, #tpu.memory_space<vmem>>, %arg4: memref<1x1xf32, #tpu.memory_space<smem>>, %arg5: memref<1x1xf32, #tpu.memory_space<smem>>, %arg6: memref<8x128xf32, #tpu.memory_space<vmem>>, %arg7: memref<8x128xf32, #tpu.memory_space<vmem>>) attributes {dimension_semantics = [#tpu.dimension_semantics<parallel>, #tpu.dimension_semantics<arbitrary>], iteration_bounds = array<i64: 1, 1>, scalar_prefetch = 0 : i64, scratch_operands = 2 : i64, tpu.core_type = #tpu.core_type<tc>, window_params = [{transform_indices = @transform_0, window_bounds = array<i64: 16, 128>}, {transform_indices = @transform_1, window_bounds = array<i64: 16, 128>}, {transform_indices = @transform_2, window_bounds = array<i64: 1, 1>}, {transform_indices = @transform_3, window_bounds = array<i64: 1, 1>}]} {
    %c0_i32 = arith.constant 0 : i32
    %0 = arith.cmpi eq, %arg1, %c0_i32 : i32
    %1 = arith.extui %0 : i1 to i32
    %c0_i32_0 = arith.constant 0 : i32
    %2 = arith.cmpi ne, %1, %c0_i32_0 : i32
    scf.if %2 {
      %cst_17 = arith.constant 0.000000e+00 : f32
      %26 = vector.broadcast %cst_17 : f32 to vector<8x128xf32>
      %c0_18 = arith.constant 0 : index
      %c0_19 = arith.constant 0 : index
      %27 = vector.load %arg6[%c0_18, %c0_19] : memref<8x128xf32, #tpu.memory_space<vmem>>, vector<8x128xf32>
      tpu.vector_store %arg6[%c0_18, %c0_19], %26 {strides = array<i32>} : memref<8x128xf32, #tpu.memory_space<vmem>>, vector<8x128xf32>,
      %cst_20 = arith.constant 0.000000e+00 : f32
      %28 = vector.broadcast %cst_20 : f32 to vector<8x128xf32>
      %c0_21 = arith.constant 0 : index
      %c0_22 = arith.constant 0 : index
      %29 = vector.load %arg7[%c0_21, %c0_22] : memref<8x128xf32, #tpu.memory_space<vmem>>, vector<8x128xf32>
      tpu.vector_store %arg7[%c0_21, %c0_22], %28 {strides = array<i32>} : memref<8x128xf32, #tpu.memory_space<vmem>>, vector<8x128xf32>,
    } else {
    }
    %c0 = arith.constant 0 : index
    %c0_1 = arith.constant 0 : index
    %3 = vector.load %arg2[%c0, %c0_1] : memref<16x128xf32, #tpu.memory_space<vmem>>, vector<16x128xf32>
    %c0_2 = arith.constant 0 : index
    %c0_3 = arith.constant 0 : index
    %4 = vector.load %arg3[%c0_2, %c0_3] : memref<16x128xf32, #tpu.memory_space<vmem>>, vector<16x128xf32>
    %cst = arith.constant 0.000000e+00 : f32
    %5 = vector.broadcast %cst : f32 to vector<16x128xf32>
    %6 = arith.cmpf one, %4, %5 : vector<16x128xf32>
    %7 = arith.subf %3, %4 : vector<16x128xf32>
    %cst_4 = arith.constant 0.000000e+00 : f32
    %8 = vector.broadcast %cst_4 : f32 to vector<16x128xf32>
    %9 = arith.select %6, %7, %8 : vector<16x128xi1>, vector<16x128xf32>
    %10 = arith.mulf %9, %9 : vector<16x128xf32>
    %11 = arith.extui %6 : vector<16x128xi1> to vector<16x128xi32>
    %12 = arith.sitofp %11 : vector<16x128xi32> to vector<16x128xf32>
    %13 = vector.shape_cast %10 : vector<16x128xf32> to vector<2x8x128xf32>
    %cst_5 = arith.constant dense<0.000000e+00> : vector<8x128xf32>
    %14 = vector.multi_reduction <add>, %13, %cst_5 [0] : vector<2x8x128xf32> to vector<8x128xf32>
    %15 = vector.shape_cast %12 : vector<16x128xf32> to vector<2x8x128xf32>
    %cst_6 = arith.constant dense<0.000000e+00> : vector<8x128xf32>
    %16 = vector.multi_reduction <add>, %15, %cst_6 [0] : vector<2x8x128xf32> to vector<8x128xf32>
    %c0_7 = arith.constant 0 : index
    %c0_8 = arith.constant 0 : index
    %17 = vector.load %arg6[%c0_7, %c0_8] : memref<8x128xf32, #tpu.memory_space<vmem>>, vector<8x128xf32>
    %18 = arith.addf %17, %14 : vector<8x128xf32>
    %c0_9 = arith.constant 0 : index
    %c0_10 = arith.constant 0 : index
    %19 = vector.load %arg6[%c0_9, %c0_10] : memref<8x128xf32, #tpu.memory_space<vmem>>, vector<8x128xf32>
    tpu.vector_store %arg6[%c0_9, %c0_10], %18 {strides = array<i32>} : memref<8x128xf32, #tpu.memory_space<vmem>>, vector<8x128xf32>,
    %c0_11 = arith.constant 0 : index
    %c0_12 = arith.constant 0 : index
    %20 = vector.load %arg7[%c0_11, %c0_12] : memref<8x128xf32, #tpu.memory_space<vmem>>, vector<8x128xf32>
    %21 = arith.addf %20, %16 : vector<8x128xf32>
    %c0_13 = arith.constant 0 : index
    %c0_14 = arith.constant 0 : index
    %22 = vector.load %arg7[%c0_13, %c0_14] : memref<8x128xf32, #tpu.memory_space<vmem>>, vector<8x128xf32>
    tpu.vector_store %arg7[%c0_13, %c0_14], %21 {strides = array<i32>} : memref<8x128xf32, #tpu.memory_space<vmem>>, vector<8x128xf32>,
    %c0_i32_15 = arith.constant 0 : i32
    %23 = arith.cmpi eq, %arg1, %c0_i32_15 : i32
    %24 = arith.extui %23 : i1 to i32
    %c0_i32_16 = arith.constant 0 : i32
    %25 = arith.cmpi ne, %24, %c0_i32_16 : i32
    scf.if %25 {
      %c0_17 = arith.constant 0 : index
      %c0_18 = arith.constant 0 : index
      %26 = vector.load %arg6[%c0_17, %c0_18] : memref<8x128xf32, #tpu.memory_space<vmem>>, vector<8x128xf32>
      %27 = vector.shape_cast %26 : vector<8x128xf32> to vector<1x8x128xf32>
      %cst_19 = arith.constant dense<0.000000e+00> : vector<1xf32>
      %28 = vector.multi_reduction <add>, %27, %cst_19 [1, 2] : vector<1x8x128xf32> to vector<1xf32>
      %29 = vector.shape_cast %28 : vector<1xf32> to vector<1x1x1xf32>
      %30 = vector.extract %29[0, 0, 0] : f32 from vector<1x1x1xf32>
      %c0_20 = arith.constant 0 : index
      %c0_21 = arith.constant 0 : index
      %31 = memref.load %arg4[%c0_20, %c0_21] : memref<1x1xf32, #tpu.memory_space<smem>>
      memref.store %30, %arg4[%c0_20, %c0_21] : memref<1x1xf32, #tpu.memory_space<smem>>
      %c0_22 = arith.constant 0 : index
      %c0_23 = arith.constant 0 : index
      %32 = vector.load %arg7[%c0_22, %c0_23] : memref<8x128xf32, #tpu.memory_space<vmem>>, vector<8x128xf32>
      %33 = vector.shape_cast %32 : vector<8x128xf32> to vector<1x8x128xf32>
      %cst_24 = arith.constant dense<0.000000e+00> : vector<1xf32>
      %34 = vector.multi_reduction <add>, %33, %cst_24 [1, 2] : vector<1x8x128xf32> to vector<1xf32>
      %35 = vector.shape_cast %34 : vector<1xf32> to vector<1x1x1xf32>
      %36 = vector.extract %35[0, 0, 0] : f32 from vector<1x1x1xf32>
      %c0_25 = arith.constant 0 : index
      %c0_26 = arith.constant 0 : index
      %37 = memref.load %arg5[%c0_25, %c0_26] : memref<1x1xf32, #tpu.memory_space<smem>>
      memref.store %36, %arg5[%c0_25, %c0_26] : memref<1x1xf32, #tpu.memory_space<smem>>
    } else {
    }
    return
  }
  func.func @transform_0(%arg0: i32, %arg1: i32) -> (i32, i32) {
    %c1_i32 = arith.constant 1 : i32
    %0 = arith.muli %arg0, %c1_i32 : i32
    %1 = arith.addi %0, %arg1 : i32
    %c0_i32 = arith.constant 0 : i32
    %c0_i32_0 = arith.constant 0 : i32
    return %1, %c0_i32 : i32, i32
  }
  func.func @transform_1(%arg0: i32, %arg1: i32) -> (i32, i32) {
    %c1_i32 = arith.constant 1 : i32
    %0 = arith.muli %arg0, %c1_i32 : i32
    %1 = arith.addi %0, %arg1 : i32
    %c0_i32 = arith.constant 0 : i32
    %c0_i32_0 = arith.constant 0 : i32
    return %1, %c0_i32 : i32, i32
  }
  func.func @transform_2(%arg0: i32, %arg1: i32) -> (i32, i32) {
    %c0_i32 = arith.constant 0 : i32
    %c0_i32_0 = arith.constant 0 : i32
    return %arg0, %c0_i32 : i32, i32
  }
  func.func @transform_3(%arg0: i32, %arg1: i32) -> (i32, i32) {
    %c0_i32 = arith.constant 0 : i32
    %c0_i32_0 = arith.constant 0 : i32
    return %arg0, %c0_i32 : i32, i32
  }
}

</mosaic_0001>

<llo_original>
// kernel: tpu_custom_call.1
$region0: #{tpu_custom_call.1}
  #allocation0 [shape = 'u32[]', space=smem, size = 0x4, offset = 0x4, fixed_abs, tag = 'smem constant byte address 0x4 - core index']
  #allocation1 [shape = 'u32[72,128]{1,0:T(1,128)}', space=vmem, size = 0x9000, scoped, tag = 'internal scratch']
  #allocation2 [shape = 'f32[8,128]{1,0:T(8,128)}', space=vmem, size = 0x1000, scoped, tag = 'scratch operand']
  #allocation3 [shape = 'f32[8,128]{1,0:T(8,128)}', space=vmem, size = 0x1000, scoped, tag = 'scratch operand']
  %s0 = inlined_call_operand.hbm [shape: f32[16,128], index: 0, kind: input, shape index: {}]
  %s1 = inlined_call_operand.hbm [shape: f32[16,128], index: 1, kind: input, shape index: {}]
  %s2 = inlined_call_operand.hbm [shape: f32[1,1], index: 2, kind: output, shape index: {0}]
  %s3 = inlined_call_operand.hbm [shape: f32[1,1], index: 3, kind: output, shape index: {1}]
  %4 = xla_tuple %s2, %s3
  %s5 = sld [smem:[#allocation0]]
  $region42: #{tpu_custom_call.1} parent=0
    _
  %s7 = ssub.s32 1, %s5
  %s8 = scalar_select 0, %s7, %s5
  $region1: #{tpu_custom_call.1} parent=0
    #allocation4 [shape = 'u8[8192]{0}', space=vmem, size = 0x2000, scoped, tag = 'input window, operand 0, single buffered']
    #allocation5 [shape = 's32[1]{0}', space=sflag, size = 0x4, scoped, tag = 'scoped memory for tpu_custom_call.1']
    #allocation6 [shape = 's32[1]{0}', space=sflag, size = 0x4, scoped, tag = 'scoped memory for tpu_custom_call.1']
    #allocation7 [shape = 'u8[8192]{0}', space=vmem, size = 0x2000, scoped, tag = 'input window, operand 1, single buffered']
    #allocation8 [shape = 's32[1]{0}', space=sflag, size = 0x4, scoped, tag = 'scoped memory for tpu_custom_call.1']
    #allocation9 [shape = 'u8[512]{0}', space=smem, size = 0x200, scoped, tag = 'output window, operand 0, single buffered']
    #allocation10 [shape = 'u8[512]{0}', space=smem, size = 0x200, scoped, tag = 'output window, operand 1, single buffered']
    #allocation11 [shape = 's32[1]{0}', space=sflag, size = 0x4, scoped, tag = 'scoped memory for tpu_custom_call.1']
    %9 = vsyncpa [#allocation5], 0
    %10 = vsyncpa [#allocation8], 0
    %11 = vsyncpa [#allocation6], 0
    %12 = vsyncpa [#allocation11], 0
    // Predicated region
    $region2: #{tpu_custom_call.1} parent=1 // pred_check
      _
    $region3: #{tpu_custom_call.1} parent=1 // pred_check_branch
      %14 = sbr.rel (0) target = $region5
    $region4: #{tpu_custom_call.1} parent=1 // pred_region
      %s15 = sadd.s32 0, 0
      %s16 = smul.u32 2, %s15
      %18 = vsyncadd [#allocation5], 0
      %s19 = smul.addr %s16, 8
      %s20 = scalar_lea.hbm %s0, %s19
      %s21 = sshll.u32 %s20, 4
      %s22 = int_to_ptr.hbm [resolvable:$true] %s21
      %s23 = sshll.u32 [#allocation4], 4
      %s24 = int_to_ptr.vmem [resolvable:$true] %s23
      %29 = dma.hbm_to_vmem [thread:$0]  %s22, 256, %s24, [#allocation5], 128, 128, 8
    $region5: #{tpu_custom_call.1} parent=1 // pred_fallthru
      _
    // Predicated region
    $region6: #{tpu_custom_call.1} parent=1 // pred_check
      _
    $region7: #{tpu_custom_call.1} parent=1 // pred_check_branch
      %31 = sbr.rel (0) target = $region9
    $region8: #{tpu_custom_call.1} parent=1 // pred_region
      %s32 = sadd.s32 0, 0
      %s33 = smul.u32 2, %s32
      %35 = vsyncadd [#allocation8], 0
      %s36 = smul.addr %s33, 8
      %s37 = scalar_lea.hbm %s1, %s36
      %s38 = sshll.u32 %s37, 4
      %s39 = int_to_ptr.hbm [resolvable:$true] %s38
      %s40 = sshll.u32 [#allocation7], 4
      %s41 = int_to_ptr.vmem [resolvable:$true] %s40
      %46 = dma.hbm_to_vmem [thread:$0]  %s39, 256, %s41, [#allocation8], 128, 128, 8
    $region9: #{tpu_custom_call.1} parent=1 // pred_fallthru
      _
    // Predicated region
    $region10: #{tpu_custom_call.1} parent=1 // pred_check
      _
    $region11: #{tpu_custom_call.1} parent=1 // pred_check_branch
      %48 = sbr.rel (0) target = $region13
    $region12: #{tpu_custom_call.1} parent=1 // pred_region
      %50 = dma.done [#allocation5], 256
    $region13: #{tpu_custom_call.1} parent=1 // pred_fallthru
      _
    // Predicated region
    $region14: #{tpu_custom_call.1} parent=1 // pred_check
      _
    $region15: #{tpu_custom_call.1} parent=1 // pred_check_branch
      %52 = sbr.rel (0) target = $region17
    $region16: #{tpu_custom_call.1} parent=1 // pred_region
      %54 = dma.done [#allocation8], 256
    $region17: #{tpu_custom_call.1} parent=1 // pred_fallthru
      _
    %s55 = sadd.s32 0, 0
    %s56 = smul.u32 2, %s55
    %s57 = sadd.s32 0, 0
    %s58 = smul.u32 2, %s57
    %p59 = scmp.eq.s32.totalorder 0, 0
    // Predicated region
    $region18: #{tpu_custom_call.1} parent=1 // pred_check
      %p60 = pneg %p59
    $region19: #{tpu_custom_call.1} parent=1 // pred_check_branch
      %62 = sbr.rel (%p60) target = $region21
    $region20: #{tpu_custom_call.1} parent=1 // pred_region
      %63 = vst [vmem:[#allocation2] sm:$0xff] 0.0
      %64 = vst [vmem:[#allocation3] sm:$0xff] 0.0
    $region21: #{tpu_custom_call.1} parent=1 // pred_fallthru
      _
    %v65 = vld [vmem:[#allocation4] sm:$0xff]
    %v66 = vld [vmem:[#allocation4 + $0x8] sm:$0xff]
    %v67 = vld [vmem:[#allocation7] sm:$0xff]
    %v68 = vld [vmem:[#allocation7 + $0x8] sm:$0xff]
    %vm69 = vcmp.ne.f32.partialorder %v67, 0.0
    %vm70 = vcmp.ne.f32.partialorder %v68, 0.0
    %v71 = vsub.f32 %v65, %v67
    %v72 = vsub.f32 %v66, %v68
    %v73 = vsel %vm69, %v71, 0.0
    %v74 = vsel %vm70, %v72, 0.0
    %v75 = vmul.f32 %v73, %v73
    %v76 = vmul.f32 %v74, %v74
    %v77 = vsel %vm69, 1, 0
    %v78 = vsel %vm70, 1, 0
    %v79 = vcvt.s32.f32 %v77
    %v80 = vcvt.s32.f32 %v78
    %v81 = vadd.f32 %v75, %v76
    %v82 = vadd.f32 %v79, %v80
    %v83 = vld [vmem:[#allocation2] sm:$0xff]
    %v84 = vadd.f32 %v83, %v81
    %85 = vst [vmem:[#allocation2] sm:$0xff] %v84
    %v86 = vld [vmem:[#allocation3] sm:$0xff]
    %v87 = vadd.f32 %v86, %v82
    %88 = vst [vmem:[#allocation3] sm:$0xff] %v87
    // Predicated region
    $region22: #{tpu_custom_call.1} parent=1 // pred_check
      %p89 = pneg %p59
    $region23: #{tpu_custom_call.1} parent=1 // pred_check_branch
      %91 = sbr.rel (%p89) target = $region25
    $region24: #{tpu_custom_call.1} parent=1 // pred_region
      %v92 = vld [vmem:[#allocation2] sm:$0xff]
      %93 = vadd.xlane.f32.xlu0 %v92
      %v94 = vpop.xlane.xlu0 %93
      %v95 = vrot.slane %v94, 4
      %v96 = vadd.f32 %v94, %v95
      %v97 = vrot.slane %v96, 2
      %v98 = vadd.f32 %v96, %v97
      %v99 = vrot.slane %v98, 1
      %v100 = vadd.f32 %v98, %v99
      %s101 = vtos %v100
      %s102 = scalar_lea.smem [#allocation9], 0
      %103 = sst [smem:[%s102]] %s101
      %v104 = vld [vmem:[#allocation3] sm:$0xff]
      %105 = vadd.xlane.f32.xlu0 %v104
      %v106 = vpop.xlane.xlu0 %105
      %v107 = vrot.slane %v106, 4
      %v108 = vadd.f32 %v106, %v107
      %v109 = vrot.slane %v108, 2
      %v110 = vadd.f32 %v108, %v109
      %v111 = vrot.slane %v110, 1
      %v112 = vadd.f32 %v110, %v111
      %s113 = vtos %v112
      %s114 = scalar_lea.smem [#allocation10], 0
      %115 = sst [smem:[%s114]] %s113
    $region25: #{tpu_custom_call.1} parent=1 // pred_fallthru
      _
    // Predicated region
    $region26: #{tpu_custom_call.1} parent=1 // pred_check
      _
    $region27: #{tpu_custom_call.1} parent=1 // pred_check_branch
      %117 = sbr.rel (0) target = $region29
    $region28: #{tpu_custom_call.1} parent=1 // pred_region
      %119 = vsyncadd [#allocation6], 0
      %s121 = sshll.u32 %s2, 4
      %s122 = int_to_ptr.hbm [resolvable:$true] %s121
      %124 = dma.smem_to_hbm [#allocation9], 16, %s122, [#allocation6]
    $region29: #{tpu_custom_call.1} parent=1 // pred_fallthru
      _
    // Predicated region
    $region30: #{tpu_custom_call.1} parent=1 // pred_check
      _
    $region31: #{tpu_custom_call.1} parent=1 // pred_check_branch
      %126 = sbr.rel (0) target = $region33
    $region32: #{tpu_custom_call.1} parent=1 // pred_region
      %128 = vsyncadd [#allocation11], 0
      %s130 = sshll.u32 %s3, 4
      %s131 = int_to_ptr.hbm [resolvable:$true] %s130
      %133 = dma.smem_to_hbm [#allocation10], 16, %s131, [#allocation11]
    $region33: #{tpu_custom_call.1} parent=1 // pred_fallthru
      _
    // Predicated region
    $region34: #{tpu_custom_call.1} parent=1 // pred_check
      _
    $region35: #{tpu_custom_call.1} parent=1 // pred_check_branch
      %135 = sbr.rel (0) target = $region37
    $region36: #{tpu_custom_call.1} parent=1 // pred_region
      %137 = dma.done [#allocation6], 16
    $region37: #{tpu_custom_call.1} parent=1 // pred_fallthru
      _
    // Predicated region
    $region38: #{tpu_custom_call.1} parent=1 // pred_check
      _
    $region39: #{tpu_custom_call.1} parent=1 // pred_check_branch
      %139 = sbr.rel (0) target = $region41
    $region40: #{tpu_custom_call.1} parent=1 // pred_region
      %141 = dma.done [#allocation11], 16
    $region41: #{tpu_custom_call.1} parent=1 // pred_fallthru
      _
    %142 = sfence
    %143 = vsyncpa [#allocation5], 1
    %144 = vsyncpa [#allocation8], 1
    %145 = vsyncpa [#allocation6], 1
    %146 = vsyncpa [#allocation11], 1

</llo_original>
